<compile_context>
chip_gen: v5e
topology: v5e:2x2
jax: 0.10.0
libtpu: 0.0.40
codegen_flags: <defaults>
</compile_context>

<pallas_src>
from functools import partial

import jax
import jax.numpy as jnp
from jax import lax
from jax.experimental import pallas as pl
from jax.experimental.pallas import tpu as pltpu


def _round_up(x, m):
    return (x + m - 1) // m * m


def _tpu_budgets():
    """Generation-aware (stream budget, vmem limit): v5e/v6e 128 MiB, v7x 64 MiB."""
    vmem_cap = 64 * 1024 * 1024  # conservative fallback (v7x)
    try:
        vmem_cap = pltpu.get_tpu_info().vmem_capacity_bytes
    except Exception:
        pass
    if vmem_cap >= 96 * 1024 * 1024:                  # v5e / v6e (128 MiB)
        return 32 * 1024 * 1024, 100 * 1024 * 1024
    return 16 * 1024 * 1024, 48 * 1024 * 1024         # v7x (64 MiB)


def _is_v5():
    try:
        return "v5" in jax.devices()[0].device_kind.lower()
    except Exception:
        return False


def _spec(shape, index_map, buffers=None):
    """BlockSpec with an optional explicit pipeline buffer count."""
    if buffers is None:
        return pl.BlockSpec(shape, index_map)
    try:
        return pl.BlockSpec(shape, index_map, pipeline_mode=pl.Buffered(buffers))
    except Exception:       # older jax without pipeline_mode: default buffering
        return pl.BlockSpec(shape, index_map)


# ----------------------------------------------------------------------------
# Pallas kernel: classifier head (mean-pool over tokens + concat + linear)
# ----------------------------------------------------------------------------
def _classifier_head_kernel(cls_ref, patch_ref, w_cls_ref, w_patch_ref, b_ref,
                            o_ref, acc_ref, *, n_valid, tn, mask_tail):
    """grid = (B tiles, token tiles); the token axis is the reduction.

    cls_ref    : (TB, K*D)      class tokens, resident across the token axis
    patch_ref  : (TB, TN, Dg)   streamed (lane-folded) patch-token tile
    w_cls_ref  : (K*D, C_pad)   head weight for the class tokens (resident)
    w_patch_ref: (Dg, C_pad)    head weight for pooled tokens, pre-scaled by
                                1/N and group-tiled (resident)
    b_ref      : (1, C_pad)     bias (resident)
    o_ref      : (TB, C_pad)    logits, written on the final token step
    acc_ref    : (TB, Dg) f32   scratch: running patch-token sum
    """
    n_idx = pl.program_id(1)

    @pl.when(n_idx == 0)
    def _init():
        acc_ref[...] = jnp.zeros_like(acc_ref)

    patch = patch_ref[...].astype(jnp.float32)                    # (TB, TN, Dg)
    if mask_tail:
        # Ragged token count: zero out tokens past the true extent (only the
        # last tile can overflow; the select is free filler on an HBM-bound
        # stream).
        tok = n_idx * tn + lax.broadcasted_iota(jnp.int32, patch.shape, 1)
        patch = jnp.where(tok < n_valid, patch, 0.0)
    # TODO(synk): if v7x profiling shows the cross-sublane sum binding, keep a
    #             (TB, 8, Dg) scratch and collapse the 8 sublanes at finalize.
    acc_ref[...] += jnp.sum(patch, axis=1)

    @pl.when(n_idx == pl.num_programs(1) - 1)
    def _finalize():
        # out = [cls | mean(patch)] @ W + b, as two MXU dots: the class tokens
        # keep their native precision and no concatenated feature / lane-offset
        # slice writes are needed (robust to arbitrary K, D).
        logits = jnp.dot(cls_ref[...], w_cls_ref[...],
                         preferred_element_type=jnp.float32)
        logits += jnp.dot(acc_ref[...], w_patch_ref[...].astype(jnp.float32),
                          preferred_element_type=jnp.float32)
        o_ref[...] = logits + b_ref[...].astype(jnp.float32)


def linear_classifier_head(cls_tokens, patch_tokens, w, b, *, tb=None, tn=None):
    """cls_tokens: (B, K, D); patch_tokens: (B, N, D); w: ((K+1)*D, C); b: (C,)/(1,C).

    The patch tokens are streamed in their native dtype (pass bf16 tensors if
    the backbone emits bf16 — no wrapper-side cast/pad copies are made); the
    token sum and the logits accumulate in f32 inside the kernel.
    """
    B, K, D = cls_tokens.shape
    _, N, _ = patch_tokens.shape
    KD = K * D
    C = w.shape[-1]
    b = jnp.reshape(b, (1, C))

    # ---- split the head weight; fold the mean's 1/N into the patch half -----
    w_cls = w[:KD]
    w_patch = w[KD:] * (1.0 / N)

    # ---- lane-dense output: pad num_classes to a multiple of 128 ------------
    C_pad = _round_up(C, 128)
    if C_pad != C:
        w_cls = jnp.pad(w_cls, ((0, 0), (0, C_pad - C)))
        w_patch = jnp.pad(w_patch, ((0, 0), (0, C_pad - C)))
        b = jnp.pad(b, ((0, 0), (0, C_pad - C)))

    # ---- small-D guard: fold g tokens into the lane dim ---------------------
    g = 1
    if D < 128 and 128 % D == 0 and N % (128 // D) == 0:
        g = 128 // D
    Dg, Ng = g * D, N // g
    patch = patch_tokens.reshape(B, Ng, Dg)       # contiguous reshape, no copy
    if g > 1:
        w_patch = jnp.tile(w_patch, (g, 1))       # (Dg, C_pad), sums the groups
    cls_flat = cls_tokens.reshape(B, KD)          # contiguous reshape, no copy

    # ---- tile sizes (generation-aware) ---------------------------------------
    stream_budget, vmem_limit = _tpu_budgets()
    patch_bufs = 3 if _is_v5() else 2             # deeper stream buffering on v5e

    if tb is None:
        if B <= 8:
            tb = B                                # == full dim: valid sublane block
        else:
            tb = min(_round_up(B, 8), 128)
            # v7x megacore: make sure the "parallel" B axis has >= 2 tiles.
            if -(-B // tb) == 1 and B >= 16:
                tb = max(8, _round_up((tb + 1) // 2, 8))
    if tn is None:
        bytes_el = jnp.dtype(patch.dtype).itemsize
        tn_cap = max(8, (stream_budget // (patch_bufs * tb * Dg * bytes_el)) // 8 * 8)
        tn = Ng if Ng <= tn_cap else tn_cap
    mask_tail = (Ng % tn) != 0

    grid = (pl.cdiv(B, tb), pl.cdiv(Ng, tn))
    kernel = partial(_classifier_head_kernel, n_valid=Ng, tn=tn, mask_tail=mask_tail)

    cost = pl.CostEstimate(
        flops=int(B * (2 * (KD + Dg) * C_pad + Ng * Dg)),
        transcendentals=0,
        bytes_accessed=int(patch.size * patch.dtype.itemsize
                           + cls_flat.size * cls_flat.dtype.itemsize
                           + w_cls.size * w_cls.dtype.itemsize
                           + w_patch.size * w_patch.dtype.itemsize
                           + b.size * b.dtype.itemsize
                           + B * C_pad * 4),
    )

    out = pl.pallas_call(
        kernel,
        out_shape=jax.ShapeDtypeStruct((B, C_pad), jnp.float32),
        grid_spec=pltpu.PrefetchScalarGridSpec(
            num_scalar_prefetch=0,
            grid=grid,
            in_specs=[
                # class tokens: resident across the token axis
                _spec((tb, KD), lambda bi, ni: (bi, 0)),
                # streamed patch-token tile (the HBM-bound input)
                _spec((tb, tn, Dg), lambda bi, ni: (bi, ni, 0),
                      buffers=patch_bufs if patch_bufs != 2 else None),
                # resident head params: single-buffered (constant index map)
                _spec((KD, C_pad), lambda bi, ni: (0, 0), buffers=1),
                _spec((Dg, C_pad), lambda bi, ni: (0, 0), buffers=1),
                _spec((1, C_pad), lambda bi, ni: (0, 0), buffers=1),
            ],
            out_specs=pl.BlockSpec((tb, C_pad), lambda bi, ni: (bi, 0)),
            scratch_shapes=[pltpu.VMEM((tb, Dg), jnp.float32)],
        ),
        compiler_params=pltpu.CompilerParams(
            # B tiles independent (megacore on v7x); token axis is the reduction.
            dimension_semantics=("parallel", "arbitrary"),
            vmem_limit_bytes=vmem_limit,
        ),
        cost_estimate=cost,
    )(cls_flat, patch, w_cls, w_patch, b)

    return out if C_pad == C else out[:, :C]


# ----------------------------------------------------------------------------
# Synthetic deterministic "backbone" (glue, plain JAX) standing in for
# backbone.get_intermediate_layers(x, n=4, return_class_token=True)
# ----------------------------------------------------------------------------
def synthetic_get_intermediate_layers(x_nchw, proj_w, n_layers=4):
    # x_nchw: (B, C, H, W) -> 4x4 patchify -> (B, N, C*16) -> project to D
    B, C, H, W = x_nchw.shape
    p = 4
    patches = (x_nchw
               .reshape(B, C, H // p, p, W // p, p)
               .transpose(0, 2, 4, 1, 3, 5)
               .reshape(B, (H // p) * (W // p), C * p * p))
    tokens0 = patches @ proj_w                                # (B, N, D)
    outs = []
    for layer in range(n_layers):
        t = jnp.tanh(tokens0 + 0.1 * (layer + 1))             # (B, N, D)
        cls = t.mean(axis=1) + 0.05 * (layer + 1)             # (B, D)
        outs.append((t, cls))
    return tuple(outs)


# ----------------------------------------------------------------------------
# _LinearClassifierWrapper forward
# ----------------------------------------------------------------------------
def linear_classifier_wrapper_forward(x_nchw, proj_w, head_w, head_b, layers=4,
                                      tb=None, tn=None):
    if layers == 4:
        inter = synthetic_get_intermediate_layers(x_nchw, proj_w, n_layers=4)
        cls_tokens = jnp.stack([inter[i][1] for i in range(4)], axis=1)  # (B,4,D)
        patch_tokens = inter[3][0]                                       # (B,N,D)
    elif layers == 1:
        # same kernel with K=1: cat([cls, patch_mean]) @ W + b
        inter = synthetic_get_intermediate_layers(x_nchw, proj_w, n_layers=1)
        cls_tokens = inter[0][1][:, None, :]                             # (B,1,D)
        patch_tokens = inter[0][0]                                       # (B,N,D)
    else:
        raise AssertionError(f"Unsupported number of layers: {layers}")
    return linear_classifier_head(cls_tokens, patch_tokens, head_w, head_b,
                                  tb=tb, tn=tn)


def reference_forward(x, proj_w, head_w, head_b, layers=4):
    if layers == 4:
        inter = synthetic_get_intermediate_layers(x, proj_w, n_layers=4)
        feats = jnp.concatenate(
            [inter[0][1], inter[1][1], inter[2][1], inter[3][1],
             inter[3][0].mean(axis=1)], axis=1)
    else:
        inter = synthetic_get_intermediate_layers(x, proj_w, n_layers=1)
        feats = jnp.concatenate([inter[0][1], inter[0][0].mean(axis=1)], axis=1)
    return (jnp.dot(feats, head_w, precision=jax.lax.Precision.HIGHEST)
            + head_b.reshape(1, -1))


if __name__ == "__main__":
    # Small deterministic shapes consistent with the module's forward (layers=4)
    B, C_in, H, W = 2, 4, 32, 32       # NCHW image, like the PyTorch input
    P = 4                              # patch size
    N = (H // P) * (W // P)            # 64 patch tokens
    D = 32                             # embed dim
    K = 4                              # layers=4 -> 4 class tokens
    NUM_CLASSES = 16                   # linear head output (padded to 128 inside)

    key = jax.random.PRNGKey(0)
    k_x, k_proj, k_w, k_b = jax.random.split(key, 4)

    x = jax.random.normal(k_x, (B, C_in, H, W), dtype=jnp.float32)
    proj_w = jax.random.normal(k_proj, (C_in * P * P, D), dtype=jnp.float32) * 0.05
    # nn.Linear(5*D, NUM_CLASSES): stored as (in, out) so the kernel does x @ W + b
    head_w = jax.random.normal(k_w, ((K + 1) * D, NUM_CLASSES), dtype=jnp.float32) * 0.05
    head_b = jax.random.normal(k_b, (1, NUM_CLASSES), dtype=jnp.float32) * 0.01

    ref4 = reference_forward(x, proj_w, head_w, head_b, layers=4)

    # Default tiling (lane folding g=4 -> Ng=16, single token step).
    out = jax.block_until_ready(
        linear_classifier_wrapper_forward(x, proj_w, head_w, head_b, layers=4))
    assert out.shape == (B, NUM_CLASSES)
    assert jnp.allclose(out, ref4, atol=2e-3, rtol=2e-3)

    # Explicit tn=8 -> 2 token steps: exercises the f32 accumulator / reduction path.
    out_tn = jax.block_until_ready(
        linear_classifier_wrapper_forward(x, proj_w, head_w, head_b, layers=4, tn=8))
    assert jnp.allclose(out_tn, ref4, atol=2e-3, rtol=2e-3)

    # layers == 1 path (K = 1): cat([cls, patch_mean]) @ W + b
    head_w1 = jax.random.normal(k_w, (2 * D, NUM_CLASSES), dtype=jnp.float32) * 0.05
    ref1 = reference_forward(x, proj_w, head_w1, head_b, layers=1)
    out1 = jax.block_until_ready(
        linear_classifier_wrapper_forward(x, proj_w, head_w1, head_b, layers=1))
    assert out1.shape == (B, NUM_CLASSES)
    assert jnp.allclose(out1, ref1, atol=2e-3, rtol=2e-3)

    # Ragged token count (N = 25): no lane folding and a partial trailing token
    # tile -> exercises the in-kernel tail masking (no HBM padding of the stream).
    Hr = Wr = 20
    xr = jax.random.normal(k_x, (B, C_in, Hr, Wr), dtype=jnp.float32)
    refr = reference_forward(xr, proj_w, head_w, head_b, layers=4)
    outr = jax.block_until_ready(
        linear_classifier_wrapper_forward(xr, proj_w, head_w, head_b, layers=4, tn=8))
    assert jnp.allclose(outr, refr, atol=2e-3, rtol=2e-3)

    print("KERNEL_OK")
</pallas_src>

<mosaic_0001>
module attributes {stable_mosaic.version = 11 : i64} {
  func.func @_classifier_head_kernel(%arg0: i32, %arg1: i32, %arg2: memref<2x128xf32, #tpu.memory_space<vmem>>, %arg3: memref<2x16x128xf32, #tpu.memory_space<vmem>>, %arg4: memref<128x128xf32, #tpu.memory_space<vmem>>, %arg5: memref<128x128xf32, #tpu.memory_space<vmem>>, %arg6: memref<1x128xf32, #tpu.memory_space<vmem>>, %arg7: memref<2x128xf32, #tpu.memory_space<vmem>>, %arg8: memref<2x128xf32, #tpu.memory_space<vmem>>) attributes {dimension_semantics = [#tpu.dimension_semantics<parallel>, #tpu.dimension_semantics<arbitrary>], iteration_bounds = array<i64: 1, 1>, scalar_prefetch = 0 : i64, scratch_operands = 1 : i64, tpu.core_type = #tpu.core_type<tc>, window_params = [{transform_indices = @transform_0, window_bounds = array<i64: 2, 128>}, {transform_indices = @transform_1, window_bounds = array<i64: 2, 16, 128>}, {pipeline_mode = #tpu.pipeline_mode<synchronous>, transform_indices = @transform_2, window_bounds = array<i64: 128, 128>}, {pipeline_mode = #tpu.pipeline_mode<synchronous>, transform_indices = @transform_3, window_bounds = array<i64: 128, 128>}, {pipeline_mode = #tpu.pipeline_mode<synchronous>, transform_indices = @transform_4, window_bounds = array<i64: 1, 128>}, {transform_indices = @transform_5, window_bounds = array<i64: 2, 128>}]} {
    %c0_i32 = arith.constant 0 : i32
    %0 = arith.cmpi eq, %arg1, %c0_i32 : i32
    %1 = arith.extui %0 : i1 to i32
    %c0_i32_0 = arith.constant 0 : i32
    %2 = arith.cmpi ne, %1, %c0_i32_0 : i32
    scf.if %2 {
      %cst_9 = arith.constant 0.000000e+00 : f32
      %11 = vector.broadcast %cst_9 : f32 to vector<2x128xf32>
      %c0_10 = arith.constant 0 : index
      %c0_11 = arith.constant 0 : index
      %12 = vector.load %arg8[%c0_10, %c0_11] : memref<2x128xf32, #tpu.memory_space<vmem>>, vector<2x128xf32>
      tpu.vector_store %arg8[%c0_10, %c0_11], %11 {strides = array<i32>} : memref<2x128xf32, #tpu.memory_space<vmem>>, vector<2x128xf32>,
    } else {
    }
    %c0 = arith.constant 0 : index
    %c0_1 = arith.constant 0 : index
    %c0_2 = arith.constant 0 : index
    %3 = vector.load %arg3[%c0, %c0_1, %c0_2] : memref<2x16x128xf32, #tpu.memory_space<vmem>>, vector<2x16x128xf32>
    %c0_3 = arith.constant 0 : index
    %c0_4 = arith.constant 0 : index
    %4 = vector.load %arg8[%c0_3, %c0_4] : memref<2x128xf32, #tpu.memory_space<vmem>>, vector<2x128xf32>
    %cst = arith.constant dense<0.000000e+00> : vector<2x128xf32>
    %5 = vector.multi_reduction <add>, %3, %cst [1] : vector<2x16x128xf32> to vector<2x128xf32>
    %6 = arith.addf %4, %5 : vector<2x128xf32>
    %c0_5 = arith.constant 0 : index
    %c0_6 = arith.constant 0 : index
    %7 = vector.load %arg8[%c0_5, %c0_6] : memref<2x128xf32, #tpu.memory_space<vmem>>, vector<2x128xf32>
    tpu.vector_store %arg8[%c0_5, %c0_6], %6 {strides = array<i32>} : memref<2x128xf32, #tpu.memory_space<vmem>>, vector<2x128xf32>,
    %c0_i32_7 = arith.constant 0 : i32
    %8 = arith.cmpi eq, %arg1, %c0_i32_7 : i32
    %9 = arith.extui %8 : i1 to i32
    %c0_i32_8 = arith.constant 0 : i32
    %10 = arith.cmpi ne, %9, %c0_i32_8 : i32
    scf.if %10 {
      %c0_9 = arith.constant 0 : index
      %c0_10 = arith.constant 0 : index
      %11 = vector.load %arg2[%c0_9, %c0_10] : memref<2x128xf32, #tpu.memory_space<vmem>>, vector<2x128xf32>
      %c0_11 = arith.constant 0 : index
      %c0_12 = arith.constant 0 : index
      %12 = vector.load %arg4[%c0_11, %c0_12] : memref<128x128xf32, #tpu.memory_space<vmem>>, vector<128x128xf32>
      %cst_13 = arith.constant dense<0.000000e+00> : vector<2x128xf32>
      %13 = tpu.matmul %11, %12, %cst_13 {dimension_numbers = #tpu.dot_dimension_numbers<[1], [0], [0], [1], [0, 0, 1, 1], [], []>} : vector<2x128xf32>, vector<128x128xf32>, vector<2x128xf32> -> vector<2x128xf32>
      %c0_14 = arith.constant 0 : index
      %c0_15 = arith.constant 0 : index
      %14 = vector.load %arg8[%c0_14, %c0_15] : memref<2x128xf32, #tpu.memory_space<vmem>>, vector<2x128xf32>
      %c0_16 = arith.constant 0 : index
      %c0_17 = arith.constant 0 : index
      %15 = vector.load %arg5[%c0_16, %c0_17] : memref<128x128xf32, #tpu.memory_space<vmem>>, vector<128x128xf32>
      %cst_18 = arith.constant dense<0.000000e+00> : vector<2x128xf32>
      %16 = tpu.matmul %14, %15, %cst_18 {dimension_numbers = #tpu.dot_dimension_numbers<[1], [0], [0], [1], [0, 0, 1, 1], [], []>} : vector<2x128xf32>, vector<128x128xf32>, vector<2x128xf32> -> vector<2x128xf32>
      %17 = arith.addf %13, %16 : vector<2x128xf32>
      %c0_19 = arith.constant 0 : index
      %c0_20 = arith.constant 0 : index
      %18 = vector.load %arg6[%c0_19, %c0_20] : memref<1x128xf32, #tpu.memory_space<vmem>>, vector<1x128xf32>
      %19 = vector.broadcast %18 : vector<1x128xf32> to vector<2x128xf32>
      %20 = arith.addf %17, %19 : vector<2x128xf32>
      %c0_21 = arith.constant 0 : index
      %c0_22 = arith.constant 0 : index
      %21 = vector.load %arg7[%c0_21, %c0_22] : memref<2x128xf32, #tpu.memory_space<vmem>>, vector<2x128xf32>
      tpu.vector_store %arg7[%c0_21, %c0_22], %20 {strides = array<i32>} : memref<2x128xf32, #tpu.memory_space<vmem>>, vector<2x128xf32>,
    } else {
    }
    return
  }
  func.func @transform_0(%arg0: i32, %arg1: i32) -> (i32, i32) {
    %c0_i32 = arith.constant 0 : i32
    %c0_i32_0 = arith.constant 0 : i32
    return %arg0, %c0_i32 : i32, i32
  }
  func.func @transform_1(%arg0: i32, %arg1: i32) -> (i32, i32, i32) {
    %c0_i32 = arith.constant 0 : i32
    %c0_i32_0 = arith.constant 0 : i32
    return %arg0, %arg1, %c0_i32 : i32, i32, i32
  }
  func.func @transform_2(%arg0: i32, %arg1: i32) -> (i32, i32) {
    %c0_i32 = arith.constant 0 : i32
    %c0_i32_0 = arith.constant 0 : i32
    %c0_i32_1 = arith.constant 0 : i32
    return %c0_i32, %c0_i32_0 : i32, i32
  }
  func.func @transform_3(%arg0: i32, %arg1: i32) -> (i32, i32) {
    %c0_i32 = arith.constant 0 : i32
    %c0_i32_0 = arith.constant 0 : i32
    %c0_i32_1 = arith.constant 0 : i32
    return %c0_i32, %c0_i32_0 : i32, i32
  }
  func.func @transform_4(%arg0: i32, %arg1: i32) -> (i32, i32) {
    %c0_i32 = arith.constant 0 : i32
    %c0_i32_0 = arith.constant 0 : i32
    %c0_i32_1 = arith.constant 0 : i32
    return %c0_i32, %c0_i32_0 : i32, i32
  }
  func.func @transform_5(%arg0: i32, %arg1: i32) -> (i32, i32) {
    %c0_i32 = arith.constant 0 : i32
    %c0_i32_0 = arith.constant 0 : i32
    return %arg0, %c0_i32 : i32, i32
  }
}

</mosaic_0001>

<llo_original>
// kernel: tpu_custom_call.1
$region0: #{tpu_custom_call.1}
  #allocation0 [shape = 'u32[]', space=smem, size = 0x4, offset = 0x4, fixed_abs, tag = 'smem constant byte address 0x4 - core index']
  #allocation1 [shape = 'u32[72,128]{1,0:T(1,128)}', space=vmem, size = 0x9000, scoped, tag = 'internal scratch']
  #allocation2 [shape = 'f32[2,128]{1,0:T(2,128)}', space=vmem, size = 0x400, scoped, tag = 'scratch operand']
  %s0 = inlined_call_operand.hbm [shape: f32[2,128], index: 0, kind: input, shape index: {}]
  %s1 = inlined_call_operand.hbm [shape: f32[2,16,128], index: 1, kind: input, shape index: {}]
  %s2 = inlined_call_operand.hbm [shape: f32[128,128], index: 2, kind: input, shape index: {}]
  %s3 = inlined_call_operand.hbm [shape: f32[128,128], index: 3, kind: input, shape index: {}]
  %s4 = inlined_call_operand.vmem [shape: f32[1,128], index: 4, kind: input, shape index: {}]
  %s5 = inlined_call_operand.hbm [shape: f32[2,128], index: 5, kind: output, shape index: {}]
  %s6 = sld [smem:[#allocation0]]
  $region54: #{tpu_custom_call.1} parent=0
    _
  %s8 = ssub.s32 1, %s6
  %s9 = scalar_select 0, %s8, %s6
  $region1: #{tpu_custom_call.1} parent=0
    #allocation3 [shape = 'u8[1024]{0}', space=vmem, size = 0x400, scoped, tag = 'input window, operand 0, single buffered']
    #allocation4 [shape = 's32[1]{0}', space=sflag, size = 0x4, scoped, tag = 'scoped memory for tpu_custom_call.1']
    #allocation5 [shape = 's32[1]{0}', space=sflag, size = 0x4, scoped, tag = 'scoped memory for tpu_custom_call.1']
    #allocation6 [shape = 'u8[16384]{0}', space=vmem, size = 0x4000, scoped, tag = 'input window, operand 1, single buffered']
    #allocation7 [shape = 's32[1]{0}', space=sflag, size = 0x4, scoped, tag = 'scoped memory for tpu_custom_call.1']
    #allocation8 [shape = 'u8[65536]{0}', space=vmem, size = 0x10000, scoped, tag = 'input window, operand 2, single buffered']
    #allocation9 [shape = 'u8[65536]{0}', space=vmem, size = 0x10000, scoped, tag = 'input window, operand 3, single buffered']
    #allocation10 [shape = 's32[1]{0}', space=sflag, size = 0x4, scoped, tag = 'scoped memory for tpu_custom_call.1']
    #allocation11 [shape = 'u8[1024]{0}', space=vmem, size = 0x400, scoped, tag = 'output window, operand 0, single buffered']
    %10 = vsyncpa [#allocation4], 0
    %11 = vsyncpa [#allocation7], 0
    %12 = vsyncpa [#allocation10], 0
    %13 = vsyncpa [#allocation5], 0
    // Predicated region
    $region2: #{tpu_custom_call.1} parent=1 // pred_check
      _
    $region3: #{tpu_custom_call.1} parent=1 // pred_check_branch
      %15 = sbr.rel (0) target = $region5
    $region4: #{tpu_custom_call.1} parent=1 // pred_region
      %17 = vsyncadd [#allocation4], 0
      %s19 = sshll.u32 %s0, 4
      %s20 = int_to_ptr.hbm [resolvable:$true] %s19
      %s21 = sshll.u32 [#allocation3], 4
      %s22 = int_to_ptr.vmem [resolvable:$true] %s21
      %24 = dma.hbm_to_vmem [thread:$0]  %s20, 32, %s22, [#allocation4]
    $region5: #{tpu_custom_call.1} parent=1 // pred_fallthru
      _
    // Predicated region
    $region6: #{tpu_custom_call.1} parent=1 // pred_check
      _
    $region7: #{tpu_custom_call.1} parent=1 // pred_check_branch
      %26 = sbr.rel (0) target = $region9
    $region8: #{tpu_custom_call.1} parent=1 // pred_region
      %28 = vsyncadd [#allocation7], 0
      %s29 = sshll.u32 %s1, 4
      %s30 = int_to_ptr.hbm [resolvable:$true] %s29
      %s31 = sshll.u32 [#allocation6], 4
      %s32 = int_to_ptr.vmem [resolvable:$true] %s31
      %37 = dma.hbm_to_vmem [thread:$0]  %s30, 512, %s32, [#allocation7], 128, 128, 8
    $region9: #{tpu_custom_call.1} parent=1 // pred_fallthru
      _
    // Predicated region
    $region10: #{tpu_custom_call.1} parent=1 // pred_check
      _
    $region11: #{tpu_custom_call.1} parent=1 // pred_check_branch
      %39 = sbr.rel (0) target = $region13
    $region12: #{tpu_custom_call.1} parent=1 // pred_region
      %41 = vsyncadd [#allocation7], 0
      %s42 = sshll.u32 %s2, 4
      %s43 = int_to_ptr.hbm [resolvable:$true] %s42
      %s44 = sshll.u32 [#allocation8], 4
      %s45 = int_to_ptr.vmem [resolvable:$true] %s44
      %50 = dma.hbm_to_vmem [thread:$0]  %s43, 2048, %s45, [#allocation7], 128, 128, 8
    $region13: #{tpu_custom_call.1} parent=1 // pred_fallthru
      _
    // Predicated region
    $region14: #{tpu_custom_call.1} parent=1 // pred_check
      _
    $region15: #{tpu_custom_call.1} parent=1 // pred_check_branch
      %52 = sbr.rel (0) target = $region17
    $region16: #{tpu_custom_call.1} parent=1 // pred_region
      %54 = vsyncadd [#allocation10], 0
      %s55 = sshll.u32 %s3, 4
      %s56 = int_to_ptr.hbm [resolvable:$true] %s55
      %s57 = sshll.u32 [#allocation9], 4
      %s58 = int_to_ptr.vmem [resolvable:$true] %s57
      %63 = dma.hbm_to_vmem [thread:$0]  %s56, 2048, %s58, [#allocation10], 128, 128, 8
    $region17: #{tpu_custom_call.1} parent=1 // pred_fallthru
      _
    // Predicated region
    $region18: #{tpu_custom_call.1} parent=1 // pred_check
      _
    $region19: #{tpu_custom_call.1} parent=1 // pred_check_branch
      %65 = sbr.rel (0) target = $region21
    $region20: #{tpu_custom_call.1} parent=1 // pred_region
      _
    $region21: #{tpu_custom_call.1} parent=1 // pred_fallthru
      _
    // Predicated region
    $region22: #{tpu_custom_call.1} parent=1 // pred_check
      _
    $region23: #{tpu_custom_call.1} parent=1 // pred_check_branch
      %67 = sbr.rel (0) target = $region25
    $region24: #{tpu_custom_call.1} parent=1 // pred_region
      %69 = dma.done [#allocation4], 32
    $region25: #{tpu_custom_call.1} parent=1 // pred_fallthru
      _
    // Predicated region
    $region26: #{tpu_custom_call.1} parent=1 // pred_check
      _
    $region27: #{tpu_custom_call.1} parent=1 // pred_check_branch
      %71 = sbr.rel (0) target = $region29
    $region28: #{tpu_custom_call.1} parent=1 // pred_region
      %73 = dma.done [#allocation7], 512
    $region29: #{tpu_custom_call.1} parent=1 // pred_fallthru
      _
    // Predicated region
    $region30: #{tpu_custom_call.1} parent=1 // pred_check
      _
    $region31: #{tpu_custom_call.1} parent=1 // pred_check_branch
      %75 = sbr.rel (0) target = $region33
    $region32: #{tpu_custom_call.1} parent=1 // pred_region
      %77 = dma.done [#allocation7], 2048
    $region33: #{tpu_custom_call.1} parent=1 // pred_fallthru
      _
    // Predicated region
    $region34: #{tpu_custom_call.1} parent=1 // pred_check
      _
    $region35: #{tpu_custom_call.1} parent=1 // pred_check_branch
      %79 = sbr.rel (0) target = $region37
    $region36: #{tpu_custom_call.1} parent=1 // pred_region
      %81 = dma.done [#allocation10], 2048
    $region37: #{tpu_custom_call.1} parent=1 // pred_fallthru
      _
    %p82 = scmp.eq.s32.totalorder 0, 0
    // Predicated region
    $region38: #{tpu_custom_call.1} parent=1 // pred_check
      %p83 = pneg %p82
    $region39: #{tpu_custom_call.1} parent=1 // pred_check_branch
      %85 = sbr.rel (%p83) target = $region41
    $region40: #{tpu_custom_call.1} parent=1 // pred_region
      %86 = vst [vmem:[#allocation2] sm:$0x3] 0.0
    $region41: #{tpu_custom_call.1} parent=1 // pred_fallthru
      _
    %v87 = vld [vmem:[#allocation6] sm:$0xff]
    %v88 = vld [vmem:[#allocation6 + $0x8] sm:$0xff]
    %v89 = vld [vmem:[#allocation6 + $0x10] sm:$0xff]
    %v90 = vld [vmem:[#allocation6 + $0x18] sm:$0xff]
    %v91 = vld [vmem:[#allocation2] sm:$0x3]
    %v92 = vadd.f32 %v87, %v88
    %v93 = vrot.slane %v92, 4
    %v94 = vadd.f32 %v92, %v93
    %v95 = vrot.slane %v94, 2
    %v96 = vadd.f32 %v94, %v95
    %v97 = vrot.slane %v96, 1
    %v98 = vadd.f32 %v96, %v97
    %v99 = vadd.f32 %v89, %v90
    %v100 = vrot.slane %v99, 4
    %v101 = vadd.f32 %v99, %v100
    %v102 = vrot.slane %v101, 2
    %v103 = vadd.f32 %v101, %v102
    %v104 = vrot.slane %v103, 1
    %v105 = vadd.f32 %v103, %v104
    %vm108 = vcmask 1041409
    %v109 = vsel %vm108, %v105, %v98
    %v111 = vadd.f32 %v91, %v109
    %112 = vst [vmem:[#allocation2] sm:$0x3] %v111
    // Predicated region
    $region42: #{tpu_custom_call.1} parent=1 // pred_check
      %p113 = pneg %p82
    $region43: #{tpu_custom_call.1} parent=1 // pred_check_branch
      %115 = sbr.rel (%p113) target = $region45
    $region44: #{tpu_custom_call.1} parent=1 // pred_region
      %v116 = vld [vmem:[#allocation3] sm:$0x3]
      %v117 = vld [vmem:[#allocation8] sm:$0xff]
      %v118 = vld [vmem:[#allocation8 + $0x8] sm:$0xff]
      %v119 = vld [vmem:[#allocation8 + $0x10] sm:$0xff]
      %v120 = vld [vmem:[#allocation8 + $0x18] sm:$0xff]
      %v121 = vld [vmem:[#allocation8 + $0x20] sm:$0xff]
      %v122 = vld [vmem:[#allocation8 + $0x28] sm:$0xff]
      %v123 = vld [vmem:[#allocation8 + $0x30] sm:$0xff]
      %v124 = vld [vmem:[#allocation8 + $0x38] sm:$0xff]
      %v125 = vld [vmem:[#allocation8 + $0x40] sm:$0xff]
      %v126 = vld [vmem:[#allocation8 + $0x48] sm:$0xff]
      %v127 = vld [vmem:[#allocation8 + $0x50] sm:$0xff]
      %v128 = vld [vmem:[#allocation8 + $0x58] sm:$0xff]
      %v129 = vld [vmem:[#allocation8 + $0x60] sm:$0xff]
      %v130 = vld [vmem:[#allocation8 + $0x68] sm:$0xff]
      %v131 = vld [vmem:[#allocation8 + $0x70] sm:$0xff]
      %v132 = vld [vmem:[#allocation8 + $0x78] sm:$0xff]
      %v133 = vld [vmem:[#allocation2] sm:$0x3]
      %v134 = vld [vmem:[#allocation9] sm:$0xff]
      %v135 = vld [vmem:[#allocation9 + $0x8] sm:$0xff]
      %v136 = vld [vmem:[#allocation9 + $0x10] sm:$0xff]
      %v137 = vld [vmem:[#allocation9 + $0x18] sm:$0xff]
      %v138 = vld [vmem:[#allocation9 + $0x20] sm:$0xff]
      %v139 = vld [vmem:[#allocation9 + $0x28] sm:$0xff]
      %v140 = vld [vmem:[#allocation9 + $0x30] sm:$0xff]
      %v141 = vld [vmem:[#allocation9 + $0x38] sm:$0xff]
      %v142 = vld [vmem:[#allocation9 + $0x40] sm:$0xff]
      %v143 = vld [vmem:[#allocation9 + $0x48] sm:$0xff]
      %v144 = vld [vmem:[#allocation9 + $0x50] sm:$0xff]
      %v145 = vld [vmem:[#allocation9 + $0x58] sm:$0xff]
      %v146 = vld [vmem:[#allocation9 + $0x60] sm:$0xff]
      %v147 = vld [vmem:[#allocation9 + $0x68] sm:$0xff]
      %v148 = vld [vmem:[#allocation9 + $0x70] sm:$0xff]
      %v149 = vld [vmem:[#allocation9 + $0x78] sm:$0xff]
      %150 = vmatpush.msra.mxu0 %v149
      %151 = vmatpush.msra.mxu0 %v148
      %152 = vmatpush.msra.mxu0 %v147
      %153 = vmatpush.msra.mxu0 %v146
      %154 = vmatpush.msra.mxu0 %v145
      %155 = vmatpush.msra.mxu0 %v144
      %156 = vmatpush.msra.mxu0 %v143
      %157 = vmatpush.msra.mxu0 %v142
      %158 = vmatpush.msra.mxu0 %v141
      %159 = vmatpush.msra.mxu0 %v140
      %160 = vmatpush.msra.mxu0 %v139
      %161 = vmatpush.msra.mxu0 %v138
      %162 = vmatpush.msra.mxu0 %v137
      %163 = vmatpush.msra.mxu0 %v136
      %164 = vmatpush.msra.mxu0 %v135
      %165 = vmatpush.msra.mxu0 %v134
      %166 = vmatmul.f32.gmra.mxu0 %v133
      %v167 = vpop.f32.mrf.mxu0
      %v168 = vadd.f32 0.0, %v167
      %169 = vdwg.mxu0
      %170 = vmatpush.msra.mxu0 %v132
      %171 = vmatpush.msra.mxu0 %v131
      %172 = vmatpush.msra.mxu0 %v130
      %173 = vmatpush.msra.mxu0 %v129
      %174 = vmatpush.msra.mxu0 %v128
      %175 = vmatpush.msra.mxu0 %v127
      %176 = vmatpush.msra.mxu0 %v126
      %177 = vmatpush.msra.mxu0 %v125
      %178 = vmatpush.msra.mxu0 %v124
      %179 = vmatpush.msra.mxu0 %v123
      %180 = vmatpush.msra.mxu0 %v122
      %181 = vmatpush.msra.mxu0 %v121
      %182 = vmatpush.msra.mxu0 %v120
      %183 = vmatpush.msra.mxu0 %v119
      %184 = vmatpush.msra.mxu0 %v118
      %185 = vmatpush.msra.mxu0 %v117
      %186 = vmatmul.f32.gmra.mxu0 %v116
      %v187 = vpop.f32.mrf.mxu0
      %v188 = vadd.f32 %v168, %v187
      %189 = vdwg.mxu0
      %v190 = vld [vmem:[%s4] sm:$0x1]
      %v192 = vperm.slane %v190, 0
      %v194 = vadd.f32 %v188, %v192
      %195 = vst [vmem:[#allocation11] sm:$0x3] %v194
    $region45: #{tpu_custom_call.1} parent=1 // pred_fallthru
      _
    // Predicated region
    $region46: #{tpu_custom_call.1} parent=1 // pred_check
      _
    $region47: #{tpu_custom_call.1} parent=1 // pred_check_branch
      %197 = sbr.rel (0) target = $region49
    $region48: #{tpu_custom_call.1} parent=1 // pred_region
      %199 = vsyncadd [#allocation5], 0
      %s201 = sshll.u32 [#allocation11], 4
      %s202 = int_to_ptr.vmem [resolvable:$true] %s201
      %s203 = sshll.u32 %s5, 4
      %s204 = int_to_ptr.hbm [resolvable:$true] %s203
      %206 = dma.vmem_to_hbm [thread:$0]  %s202, 32, %s204, [#allocation5]
    $region49: #{tpu_custom_call.1} parent=1 // pred_fallthru
      _
    // Predicated region
    $region50: #{tpu_custom_call.1} parent=1 // pred_check
      _
    $region51: #{tpu_custom_call.1} parent=1 // pred_check_branch
      %208 = sbr.rel (0) target = $region53
    $region52: #{tpu_custom_call.1} parent=1 // pred_region
      %210 = dma.done [#allocation5], 32
    $region53: #{tpu_custom_call.1} parent=1 // pred_fallthru
      _
    %211 = vsyncpa [#allocation4], 1
    %212 = vsyncpa [#allocation7], 1
    %213 = vsyncpa [#allocation10], 1
    %214 = vsyncpa [#allocation5], 1

</llo_original>
